<compile_context>
chip_gen: v7x
topology: tpu7x:2x2x1
jax: 0.10.0
libtpu: 0.0.40
codegen_flags: <defaults>
</compile_context>

<pallas_src>
import functools

import jax
import jax.numpy as jnp
from jax.experimental import pallas as pl
from jax.experimental.pallas import tpu as pltpu


def _mlp_kernel(x_ref, w1_ref, b1_ref, w2_ref, b2_ref, o_ref, *, softmax):
    # dense1: bf16 inputs, f32 MXU accumulation; bias + ReLU on the VPU.
    h = jnp.dot(x_ref[...], w1_ref[...], preferred_element_type=jnp.float32)
    h = jnp.maximum(h + b1_ref[...], 0.0)
    # dropout is nn.Identity() in the default config -> no-op.
    # dense2
    o = jnp.dot(h.astype(w2_ref.dtype), w2_ref[...],
                preferred_element_type=jnp.float32)
    o = o + b2_ref[...]
    if softmax:
        # nn.Softmax() with no dim == softmax over the last dim for 2-D input.
        m = jnp.max(o, axis=-1, keepdims=True)
        e = jnp.exp(o - m)
        o = e * pl.reciprocal(jnp.sum(e, axis=-1, keepdims=True), approx=True)
    # Single contiguous full-block store per tile (friendly to v5e's 1 vst slot).
    o_ref[...] = o.astype(o_ref.dtype)


def pt_model_forward(x, w1, b1, w2, b2, *, softmax=False, tile_b=1024):
    """x: (B, n_features) f32; w1: (n_features, 20); b1: (20,);
    w2: (20, n_labels); b2: (n_labels,)  (PyTorch weights pre-transposed to
    (in, out)).  Returns (B, n_labels) f32."""
    batch, n_features = x.shape
    hidden, n_labels = w2.shape

    # --- pad hidden (20 -> 32) to a sublane-aligned size; exact (zeros). ---
    hidden_pad = max(8, ((hidden + 7) // 8) * 8)
    pad_h = hidden_pad - hidden
    w1p = jnp.pad(w1, ((0, 0), (0, pad_h)))
    b1p = jnp.pad(b1, ((0, pad_h),))
    w2p = jnp.pad(w2, ((0, pad_h), (0, 0)))

    # --- bf16 streaming inputs / weights, f32 biases and accumulation. ---
    x_bf = x.astype(jnp.bfloat16)
    w1_bf = w1p.astype(jnp.bfloat16)
    w2_bf = w2p.astype(jnp.bfloat16)
    b1_2d = b1p.reshape(1, -1).astype(jnp.float32)
    b2_2d = b2.reshape(1, -1).astype(jnp.float32)

    # --- batch tiling: multiple of 8 rows, capped at tile_b. ---
    tb = min(tile_b, max(8, ((batch + 7) // 8) * 8))
    batch_pad = ((batch + tb - 1) // tb) * tb
    if batch_pad != batch:
        x_bf = jnp.pad(x_bf, ((0, batch_pad - batch), (0, 0)))
    grid = (batch_pad // tb,)

    kernel = functools.partial(_mlp_kernel, softmax=softmax)

    out = pl.pallas_call(
        kernel,
        out_shape=jax.ShapeDtypeStruct((batch_pad, n_labels), jnp.float32),
        grid=grid,
        in_specs=[
            pl.BlockSpec((tb, n_features), lambda i: (i, 0)),   # x tiles
            pl.BlockSpec(w1_bf.shape, lambda i: (0, 0)),        # grid-invariant
            pl.BlockSpec(b1_2d.shape, lambda i: (0, 0)),
            pl.BlockSpec(w2_bf.shape, lambda i: (0, 0)),
            pl.BlockSpec(b2_2d.shape, lambda i: (0, 0)),
        ],
        out_specs=pl.BlockSpec((tb, n_labels), lambda i: (i, 0)),
        compiler_params=pltpu.CompilerParams(
            dimension_semantics=("parallel",),
            vmem_limit_bytes=32 * 1024 * 1024,
        ),
    )(x_bf, w1_bf, b1_2d, w2_bf, b2_2d)

    return out[:batch]


def _reference(x, w1, b1, w2, b2, *, softmax):
    """Plain-JAX reference with the same bf16-input / f32-accum math."""
    h = jnp.dot(x.astype(jnp.bfloat16), w1.astype(jnp.bfloat16),
                preferred_element_type=jnp.float32) + b1
    h = jnp.maximum(h, 0.0)
    o = jnp.dot(h.astype(jnp.bfloat16), w2.astype(jnp.bfloat16),
                preferred_element_type=jnp.float32) + b2
    if softmax:
        o = jax.nn.softmax(o, axis=-1)
    return o


if __name__ == "__main__":
    # Small shapes consistent with the module: n_features=32, hidden=20, labels=4.
    batch, n_features, hidden, n_labels = 16, 32, 20, 4

    key = jax.random.PRNGKey(0)
    kx, k1, k2, k3, k4 = jax.random.split(key, 5)

    x = jax.random.normal(kx, (batch, n_features), dtype=jnp.float32)

    # Deterministic init mimicking torch Linear uniform(-1/sqrt(in), 1/sqrt(in)).
    lim1 = 1.0 / jnp.sqrt(jnp.float32(n_features))
    w1 = jax.random.uniform(k1, (n_features, hidden), jnp.float32, -lim1, lim1)
    b1 = jax.random.uniform(k2, (hidden,), jnp.float32, -lim1, lim1)
    lim2 = 1.0 / jnp.sqrt(jnp.float32(hidden))
    w2 = jax.random.uniform(k3, (hidden, n_labels), jnp.float32, -lim2, lim2)
    b2 = jax.random.uniform(k4, (n_labels,), jnp.float32, -lim2, lim2)

    # Default config (softmax=False); tile_b=8 exercises a 2-step batch grid.
    out = jax.block_until_ready(
        pt_model_forward(x, w1, b1, w2, b2, softmax=False, tile_b=8))
    ref = _reference(x, w1, b1, w2, b2, softmax=False)
    assert out.shape == (batch, n_labels)
    assert jnp.allclose(out, ref, atol=1e-2, rtol=1e-2), \
        float(jnp.max(jnp.abs(out - ref)))

    # softmax=True config.
    out_s = jax.block_until_ready(
        pt_model_forward(x, w1, b1, w2, b2, softmax=True, tile_b=8))
    ref_s = _reference(x, w1, b1, w2, b2, softmax=True)
    assert jnp.allclose(out_s, ref_s, atol=2e-2, rtol=2e-2), \
        float(jnp.max(jnp.abs(out_s - ref_s)))

    # TODO(synk): nn.Dropout(0.5) (dropout=True config) is not implemented;
    # the default config uses nn.Identity, which this kernel matches.
    print("KERNEL_OK")
</pallas_src>

<mosaic_0001>
module attributes {stable_mosaic.version = 11 : i64} {
  func.func @_mlp_kernel(%arg0: i32, %arg1: memref<8x32xbf16, #tpu.memory_space<vmem>>, %arg2: memref<32x24xbf16, #tpu.memory_space<vmem>>, %arg3: memref<1x24xf32, #tpu.memory_space<vmem>>, %arg4: memref<24x4xbf16, #tpu.memory_space<vmem>>, %arg5: memref<1x4xf32, #tpu.memory_space<vmem>>, %arg6: memref<8x4xf32, #tpu.memory_space<vmem>>) attributes {dimension_semantics = [#tpu.dimension_semantics<parallel>], iteration_bounds = array<i64: 2>, scalar_prefetch = 0 : i64, scratch_operands = 0 : i64, tpu.core_type = #tpu.core_type<tc>, window_params = [{transform_indices = @transform_0, window_bounds = array<i64: 8, 32>}, {pipeline_mode = #tpu.pipeline_mode<synchronous>, transform_indices = @transform_1, window_bounds = array<i64: 32, 24>}, {pipeline_mode = #tpu.pipeline_mode<synchronous>, transform_indices = @transform_2, window_bounds = array<i64: 1, 24>}, {pipeline_mode = #tpu.pipeline_mode<synchronous>, transform_indices = @transform_3, window_bounds = array<i64: 24, 4>}, {pipeline_mode = #tpu.pipeline_mode<synchronous>, transform_indices = @transform_4, window_bounds = array<i64: 1, 4>}, {transform_indices = @transform_5, window_bounds = array<i64: 8, 4>}]} {
    %c0 = arith.constant 0 : index
    %c0_0 = arith.constant 0 : index
    %0 = vector.load %arg1[%c0, %c0_0] : memref<8x32xbf16, #tpu.memory_space<vmem>>, vector<8x32xbf16>
    %c0_1 = arith.constant 0 : index
    %c0_2 = arith.constant 0 : index
    %1 = vector.load %arg2[%c0_1, %c0_2] : memref<32x24xbf16, #tpu.memory_space<vmem>>, vector<32x24xbf16>
    %cst = arith.constant dense<0.000000e+00> : vector<8x24xf32>
    %2 = tpu.matmul %0, %1, %cst {dimension_numbers = #tpu.dot_dimension_numbers<[1], [0], [0], [1], [0, 0, 1, 1], [], []>} : vector<8x32xbf16>, vector<32x24xbf16>, vector<8x24xf32> -> vector<8x24xf32>
    %c0_3 = arith.constant 0 : index
    %c0_4 = arith.constant 0 : index
    %3 = vector.load %arg3[%c0_3, %c0_4] : memref<1x24xf32, #tpu.memory_space<vmem>>, vector<1x24xf32>
    %4 = vector.broadcast %3 : vector<1x24xf32> to vector<8x24xf32>
    %5 = arith.addf %2, %4 : vector<8x24xf32>
    %cst_5 = arith.constant 0.000000e+00 : f32
    %6 = vector.broadcast %cst_5 : f32 to vector<8x24xf32>
    %7 = arith.maximumf %5, %6 : vector<8x24xf32>
    %8 = arith.truncf %7 : vector<8x24xf32> to vector<8x24xbf16>
    %c0_6 = arith.constant 0 : index
    %c0_7 = arith.constant 0 : index
    %9 = vector.load %arg4[%c0_6, %c0_7] : memref<24x4xbf16, #tpu.memory_space<vmem>>, vector<24x4xbf16>
    %cst_8 = arith.constant dense<0.000000e+00> : vector<8x4xf32>
    %10 = tpu.matmul %8, %9, %cst_8 {dimension_numbers = #tpu.dot_dimension_numbers<[1], [0], [0], [1], [0, 0, 1, 1], [], []>} : vector<8x24xbf16>, vector<24x4xbf16>, vector<8x4xf32> -> vector<8x4xf32>
    %c0_9 = arith.constant 0 : index
    %c0_10 = arith.constant 0 : index
    %11 = vector.load %arg5[%c0_9, %c0_10] : memref<1x4xf32, #tpu.memory_space<vmem>>, vector<1x4xf32>
    %12 = vector.broadcast %11 : vector<1x4xf32> to vector<8x4xf32>
    %13 = arith.addf %10, %12 : vector<8x4xf32>
    %c0_11 = arith.constant 0 : index
    %c0_12 = arith.constant 0 : index
    %14 = vector.load %arg6[%c0_11, %c0_12] : memref<8x4xf32, #tpu.memory_space<vmem>>, vector<8x4xf32>
    tpu.vector_store %arg6[%c0_11, %c0_12], %13 {strides = array<i32>} : memref<8x4xf32, #tpu.memory_space<vmem>>, vector<8x4xf32>,
    return
  }
  func.func @transform_0(%arg0: i32) -> (i32, i32) {
    %c0_i32 = arith.constant 0 : i32
    %c0_i32_0 = arith.constant 0 : i32
    return %arg0, %c0_i32 : i32, i32
  }
  func.func @transform_1(%arg0: i32) -> (i32, i32) {
    %c0_i32 = arith.constant 0 : i32
    %c0_i32_0 = arith.constant 0 : i32
    %c0_i32_1 = arith.constant 0 : i32
    return %c0_i32, %c0_i32_0 : i32, i32
  }
  func.func @transform_2(%arg0: i32) -> (i32, i32) {
    %c0_i32 = arith.constant 0 : i32
    %c0_i32_0 = arith.constant 0 : i32
    %c0_i32_1 = arith.constant 0 : i32
    return %c0_i32, %c0_i32_0 : i32, i32
  }
  func.func @transform_3(%arg0: i32) -> (i32, i32) {
    %c0_i32 = arith.constant 0 : i32
    %c0_i32_0 = arith.constant 0 : i32
    %c0_i32_1 = arith.constant 0 : i32
    return %c0_i32, %c0_i32_0 : i32, i32
  }
  func.func @transform_4(%arg0: i32) -> (i32, i32) {
    %c0_i32 = arith.constant 0 : i32
    %c0_i32_0 = arith.constant 0 : i32
    %c0_i32_1 = arith.constant 0 : i32
    return %c0_i32, %c0_i32_0 : i32, i32
  }
  func.func @transform_5(%arg0: i32) -> (i32, i32) {
    %c0_i32 = arith.constant 0 : i32
    %c0_i32_0 = arith.constant 0 : i32
    return %arg0, %c0_i32 : i32, i32
  }
}

</mosaic_0001>

<llo_original>
// kernel: tpu_custom_call.1
$region0: #{tpu_custom_call.1}
  #allocation0 [shape = 'u32[]', space=smem, size = 0x4, offset = 0x4, fixed_abs, tag = 'smem constant byte address 0x4 - core index']
  #allocation1 [shape = 'u32[144,128]{1,0:T(1,128)}', space=vmem, size = 0x12000, scoped, tag = 'internal scratch']
  %s0 = inlined_call_operand.vmem [shape: bf16[16,32], index: 0, kind: input, shape index: {}]
  %s1 = inlined_call_operand.vmem [shape: bf16[32,24], index: 1, kind: input, shape index: {}]
  %s2 = inlined_call_operand.vmem [shape: f32[1,24], index: 2, kind: input, shape index: {}]
  %s3 = inlined_call_operand.vmem [shape: bf16[24,4], index: 3, kind: input, shape index: {}]
  %s4 = inlined_call_operand.vmem [shape: f32[1,4], index: 4, kind: input, shape index: {}]
  %s5 = inlined_call_operand.vmem [shape: f32[16,4], index: 5, kind: output, shape index: {}]
  %s6 = sld [smem:[#allocation0]]
  $region53: #{tpu_custom_call.1} parent=0
    _
  %s8 = ssub.s32 1, %s6
  %s9 = scalar_select 0, %s8, %s6
  loop: start=0, step=1, limit=4
  $region2: #{tpu_custom_call.1} parent=0 // loop_pre_header
    _
  $region3: #{tpu_custom_call.1} parent=0 // loop_header
    %s11 = sphi 0, %s15
    %p12 = scmp.ge.s32.totalorder %s11, 4
    %s21 = sphi 0, %s23
    %s24 = sphi 0, %s21
    %s25 = sphi 0, %s24
    %s41 = sphi 0, %s25
    %s45 = sphi 0, %s45
    %s47 = sphi 0, %s45
    %s48 = sphi 0, %s47
    %s62 = sphi 0, %s48
    %s66 = sphi 0, %s66
    %s68 = sphi 0, %s66
    %s69 = sphi 0, %s68
    %s83 = sphi 0, %s69
    %s87 = sphi 0, %s87
    %s89 = sphi 0, %s87
    %s90 = sphi 0, %s89
    %s104 = sphi 0, %s90
    %s108 = sphi 0, %s108
    %s110 = sphi 0, %s108
    %s111 = sphi 0, %s110
    %s125 = sphi 0, %s111
    %s131 = sphi 0, %s133
    %s134 = sphi 0, %s131
    %s135 = sphi 0, %s134
    %s151 = sphi 0, %s135
  $region4: #{tpu_custom_call.1} parent=0 // loop_header_branch
    %14 = sbr.rel (%p12) target = $region8
  $region5: #{tpu_custom_call.1} parent=0 // loop_body
    %s16 = ssub.s32 %s11, 1
    %s17 = ssub.s32 %s11, 2
    %s18 = sadd.s32 %s11, 1
    %s19 = ssub.s32 %s11, %s18
    %p20 = scmp.eq.s32.totalorder %s19, 0
    %s22 = sadd.s32 %s21, 1
    %s23 = scalar_select %p20, %s21, %s22
    %p26 = pneg %p20
    %p27 = scmp.eq.s32.totalorder %s11, 1
    %p28 = por %p26, %p27
    %p29 = scmp.ne.s32.totalorder %s21, %s24
    %p30 = scmp.eq.s32.totalorder %s11, 0
    %p31 = por %p29, %p30
    %p32 = scmp.ne.s32.totalorder %s21, %s24
    %p33 = scmp.eq.s32.totalorder %s16, 1
    %p34 = por %p32, %p33
    %p35 = scmp.ne.s32.totalorder %s24, %s25
    %p36 = scmp.eq.s32.totalorder %s16, 0
    %p37 = por %p35, %p36
    %p38 = scmp.ne.s32.totalorder %s24, %s25
    %p39 = scmp.eq.s32.totalorder %s17, 1
    %p40 = por %p38, %p39
    %p42 = scmp.ne.s32.totalorder %s25, %s41
    %p43 = scmp.eq.s32.totalorder %s17, 0
    %p44 = por %p42, %p43
    %s46 = sadd.s32 %s45, 1
    %p49 = scmp.eq.s32.totalorder %s11, 1
    %p50 = scmp.ne.s32.totalorder %s45, %s47
    %p51 = scmp.eq.s32.totalorder %s11, 0
    %p52 = por %p50, %p51
    %p53 = scmp.ne.s32.totalorder %s45, %s47
    %p54 = scmp.eq.s32.totalorder %s16, 1
    %p55 = por %p53, %p54
    %p56 = scmp.ne.s32.totalorder %s47, %s48
    %p57 = scmp.eq.s32.totalorder %s16, 0
    %p58 = por %p56, %p57
    %p59 = scmp.ne.s32.totalorder %s47, %s48
    %p60 = scmp.eq.s32.totalorder %s17, 1
    %p61 = por %p59, %p60
    %p63 = scmp.ne.s32.totalorder %s48, %s62
    %p64 = scmp.eq.s32.totalorder %s17, 0
    %p65 = por %p63, %p64
    %s67 = sadd.s32 %s66, 1
    %p70 = scmp.eq.s32.totalorder %s11, 1
    %p71 = scmp.ne.s32.totalorder %s66, %s68
    %p72 = scmp.eq.s32.totalorder %s11, 0
    %p73 = por %p71, %p72
    %p74 = scmp.ne.s32.totalorder %s66, %s68
    %p75 = scmp.eq.s32.totalorder %s16, 1
    %p76 = por %p74, %p75
    %p77 = scmp.ne.s32.totalorder %s68, %s69
    %p78 = scmp.eq.s32.totalorder %s16, 0
    %p79 = por %p77, %p78
    %p80 = scmp.ne.s32.totalorder %s68, %s69
    %p81 = scmp.eq.s32.totalorder %s17, 1
    %p82 = por %p80, %p81
    %p84 = scmp.ne.s32.totalorder %s69, %s83
    %p85 = scmp.eq.s32.totalorder %s17, 0
    %p86 = por %p84, %p85
    %s88 = sadd.s32 %s87, 1
    %p91 = scmp.eq.s32.totalorder %s11, 1
    %p92 = scmp.ne.s32.totalorder %s87, %s89
    %p93 = scmp.eq.s32.totalorder %s11, 0
    %p94 = por %p92, %p93
    %p95 = scmp.ne.s32.totalorder %s87, %s89
    %p96 = scmp.eq.s32.totalorder %s16, 1
    %p97 = por %p95, %p96
    %p98 = scmp.ne.s32.totalorder %s89, %s90
    %p99 = scmp.eq.s32.totalorder %s16, 0
    %p100 = por %p98, %p99
    %p101 = scmp.ne.s32.totalorder %s89, %s90
    %p102 = scmp.eq.s32.totalorder %s17, 1
    %p103 = por %p101, %p102
    %p105 = scmp.ne.s32.totalorder %s90, %s104
    %p106 = scmp.eq.s32.totalorder %s17, 0
    %p107 = por %p105, %p106
    %s109 = sadd.s32 %s108, 1
    %p112 = scmp.eq.s32.totalorder %s11, 1
    %p113 = scmp.ne.s32.totalorder %s108, %s110
    %p114 = scmp.eq.s32.totalorder %s11, 0
    %p115 = por %p113, %p114
    %p116 = scmp.ne.s32.totalorder %s108, %s110
    %p117 = scmp.eq.s32.totalorder %s16, 1
    %p118 = por %p116, %p117
    %p119 = scmp.ne.s32.totalorder %s110, %s111
    %p120 = scmp.eq.s32.totalorder %s16, 0
    %p121 = por %p119, %p120
    %p122 = scmp.ne.s32.totalorder %s110, %s111
    %p123 = scmp.eq.s32.totalorder %s17, 1
    %p124 = por %p122, %p123
    %p126 = scmp.ne.s32.totalorder %s111, %s125
    %p127 = scmp.eq.s32.totalorder %s17, 0
    %p128 = por %p126, %p127
    %s129 = ssub.s32 %s11, %s18
    %p130 = scmp.eq.s32.totalorder %s129, 0
    %s132 = sadd.s32 %s131, 1
    %s133 = scalar_select %p130, %s131, %s132
    %p136 = pneg %p130
    %p137 = scmp.eq.s32.totalorder %s11, 1
    %p138 = por %p136, %p137
    %p139 = scmp.ne.s32.totalorder %s131, %s134
    %p140 = scmp.eq.s32.totalorder %s11, 0
    %p141 = por %p139, %p140
    %p142 = scmp.ne.s32.totalorder %s131, %s134
    %p143 = scmp.eq.s32.totalorder %s16, 1
    %p144 = por %p142, %p143
    %p145 = scmp.ne.s32.totalorder %s134, %s135
    %p146 = scmp.eq.s32.totalorder %s16, 0
    %p147 = por %p145, %p146
    %p148 = scmp.ne.s32.totalorder %s134, %s135
    %p149 = scmp.eq.s32.totalorder %s17, 1
    %p150 = por %p148, %p149
    %p152 = scmp.ne.s32.totalorder %s135, %s151
    %p153 = scmp.eq.s32.totalorder %s17, 0
    %p154 = por %p152, %p153
    %p155 = scmp.le.s32.totalorder 1, %s11
    %p156 = scmp.lt.s32.totalorder %s11, 3
    %p157 = pnand %p155, %p156
    %p158 = pneg %p157
    // Predicated region
    $region9: #{tpu_custom_call.1} parent=5 // pred_check
      _
    $region10: #{tpu_custom_call.1} parent=5 // pred_check_branch
      %160 = sbr.rel (%p157) target = $region12
    $region11: #{tpu_custom_call.1} parent=5 // pred_region
      %s161 = ssub.s32 %s11, 1
      // Predicated region
      $region13: #{tpu_custom_call.1} parent=11 // pred_check
        %p162 = pneg %p58
      $region14: #{tpu_custom_call.1} parent=11 // pred_check_branch
        %164 = sbr.rel (%p162) target = $region16
      $region15: #{tpu_custom_call.1} parent=11 // pred_region
        _
      $region16: #{tpu_custom_call.1} parent=11 // pred_fallthru
        _
      // Predicated region
      $region17: #{tpu_custom_call.1} parent=11 // pred_check
        %p165 = pneg %p79
      $region18: #{tpu_custom_call.1} parent=11 // pred_check_branch
        %167 = sbr.rel (%p165) target = $region20
      $region19: #{tpu_custom_call.1} parent=11 // pred_region
        _
      $region20: #{tpu_custom_call.1} parent=11 // pred_fallthru
        _
      // Predicated region
      $region21: #{tpu_custom_call.1} parent=11 // pred_check
        %p168 = pneg %p100
      $region22: #{tpu_custom_call.1} parent=11 // pred_check_branch
        %170 = sbr.rel (%p168) target = $region24
      $region23: #{tpu_custom_call.1} parent=11 // pred_region
        _
      $region24: #{tpu_custom_call.1} parent=11 // pred_fallthru
        _
      // Predicated region
      $region25: #{tpu_custom_call.1} parent=11 // pred_check
        %p171 = pneg %p121
      $region26: #{tpu_custom_call.1} parent=11 // pred_check_branch
        %173 = sbr.rel (%p171) target = $region28
      $region27: #{tpu_custom_call.1} parent=11 // pred_region
        _
      $region28: #{tpu_custom_call.1} parent=11 // pred_fallthru
        _
    $region12: #{tpu_custom_call.1} parent=5 // pred_fallthru
      _
    %p174 = scmp.lt.s32.totalorder %s11, 2
    // Predicated region
    $region29: #{tpu_custom_call.1} parent=5 // pred_check
      %p175 = pneg %p174
    $region30: #{tpu_custom_call.1} parent=5 // pred_check_branch
      %177 = sbr.rel (%p175) target = $region32
    $region31: #{tpu_custom_call.1} parent=5 // pred_region
      // Predicated region
      $region33: #{tpu_custom_call.1} parent=31 // pred_check
        %p178 = pneg %p31
      $region34: #{tpu_custom_call.1} parent=31 // pred_check_branch
        %180 = sbr.rel (%p178) target = $region36
      $region35: #{tpu_custom_call.1} parent=31 // pred_region
        %p181 = scmp.lt.s32.totalorder %s11, 1
        %s182 = scalar_select %p181, %s11, 1
        %s183 = smul.addr %s182, 4
        %s184 = scalar_lea.vmem %s0, %s183
      $region36: #{tpu_custom_call.1} parent=31 // pred_fallthru
        _
    $region32: #{tpu_custom_call.1} parent=5 // pred_fallthru
      _
    %p185 = scmp.le.s32.totalorder 1, %s11
    %p186 = scmp.lt.s32.totalorder %s11, 3
    %p187 = pnand %p185, %p186
    %p188 = pneg %p187
    // Predicated region
    $region37: #{tpu_custom_call.1} parent=5 // pred_check
      _
    $region38: #{tpu_custom_call.1} parent=5 // pred_check_branch
      %190 = sbr.rel (%p187) target = $region40
    $region39: #{tpu_custom_call.1} parent=5 // pred_region
      %s191 = ssub.s32 %s11, 1
      %p192 = scmp.lt.s32.totalorder %s16, 1
      %s193 = scalar_select %p192, %s16, 1
      %s194 = smul.addr %s193, 4
      %s195 = scalar_lea.vmem %s0, %s194
      %p196 = pneg %p37
      %p197 = pneg %p34
      %p198 = pneg %p58
      %p199 = pneg %p55
      %p200 = pneg %p79
      %p201 = pneg %p76
      %p202 = pneg %p100
      %p203 = pneg %p97
      %p204 = pneg %p121
      %p205 = pneg %p118
      %p206 = pneg %p147
      %p207 = pneg %p144
      %p208 = scmp.lt.s32.totalorder %s16, 1
      %s209 = scalar_select %p208, %s16, 1
      %s210 = smul.addr %s209, 8
      %s211 = scalar_lea.vmem %s5, %s210
      %p212 = scmp.lt.s32.totalorder %s16, 1
      %s213 = scalar_select %p212, %s16, 1
      %s214 = smul.addr %s213, 4
      %s215 = scalar_lea.vmem %s0, %s214
      %p216 = scmp.lt.s32.totalorder %s16, 1
      %s217 = scalar_select %p216, %s16, 1
      %s218 = smul.addr %s217, 8
      %s219 = scalar_lea.vmem %s5, %s218
      %v221 = vld [vmem:[%s215] sm:$0xf]
      %v222 = vld [vmem:[%s1] sm:$0xf]
      %v223 = vld [vmem:[%s1 + $0x4] sm:$0xf]
      %v224 = vld [vmem:[%s1 + $0x8] sm:$0xf]
      %v225 = vld [vmem:[%s1 + $0xc] sm:$0xf]
      %v226 = vld [vmem:[%s2] sm:$0x1]
      %v228 = vlaneseq
      %v229 = vshrl.u32 %v228, 7
      %v230 = vsub.s32 0, %v229
      %v231 = vrot.slane %v226, %v230
      %v237 = vunpack.c.l.b16 %v222
      %v238 = vunpack.c.l.b16 %v223
      %v239 = vunpack.c.l.b16 %v224
      %v240 = vunpack.c.l.b16 %v225
      %v241 = vpack.c.b16 %v238, %v237
      %v242 = vpack.c.b16 %v240, %v239
      %vm245 = vcmask 261120
      %v247 = vsel %vm245, %v221, 0
      %249 = vmatprep.subr.bf16.mxu0 0
      %250 = vmatpush1.bf16.msra.mxu0 %v241
      %251 = vmatprep.subr.bf16.mxu0 0
      %252 = vmatpush1.bf16.msra.mxu0 %v242
      %253 = vmatprep.subr.bf16.mxu0 0
      %254 = vmatpush1.bf16.msra.mxu0 0
      %255 = vmatprep.subr.bf16.mxu0 0
      %256 = vmatpush1.bf16.msra.mxu0 0
      %257 = vmatprep.subr.bf16.mxu0 0
      %258 = vmatpush1.bf16.msra.mxu0 0
      %259 = vmatprep.subr.bf16.mxu0 0
      %260 = vmatpush1.bf16.msra.mxu0 0
      %261 = vmatprep.subr.bf16.mxu0 0
      %262 = vmatpush1.bf16.msra.mxu0 0
      %263 = vmatprep.subr.bf16.mxu0 0
      %264 = vmatpush1.bf16.msra.mxu0 0
      %265 = vmatprep.subr.bf16.mxu0 0
      %266 = vmatpush1.bf16.msra.mxu0 0
      %267 = vmatprep.subr.bf16.mxu0 0
      %268 = vmatpush1.bf16.msra.mxu0 0
      %269 = vmatprep.subr.bf16.mxu0 0
      %270 = vmatpush1.bf16.msra.mxu0 0
      %271 = vmatprep.subr.bf16.mxu0 0
      %272 = vmatpush1.bf16.msra.mxu0 0
      %273 = vmatprep.subr.bf16.mxu0 0
      %274 = vmatpush1.bf16.msra.mxu0 0
      %275 = vmatprep.subr.bf16.mxu0 0
      %276 = vmatpush1.bf16.msra.mxu0 0
      %277 = vmatprep.subr.bf16.mxu0 0
      %278 = vmatpush1.bf16.msra.mxu0 0
      %279 = vmatprep.subr.bf16.mxu0 0
      %280 = vmatpush1.bf16.msra.mxu0 0
      %281 = vmatprep.mubr.bf16.mxu0 0
      %282 = vmatmul.mubr.bf16.gmra.mrb[0].mxu0 %v247
      %v283 = vpop.f32.mrb[0].mxu0
      %v284 = vadd.f32 %v231, %v283
      %v285 = vpop.f32.mrb[0].mxu0
      %v286 = vpop.f32.mrb[0].mxu0
      %v287 = vpop.f32.mrb[0].mxu0
      %288 = vdwg.mxu0
      %v289 = vmax.f32 %v284, 0.0
      %v290 = vpack.c.bf16 %v289, %v289
      %v291 = vld [vmem:[%s3] sm:$0xf]
      %v292 = vld [vmem:[%s3 + $0x4] sm:$0xf]
      %v293 = vld [vmem:[%s3 + $0x8] sm:$0xf]
      %v294 = vld [vmem:[%s4] sm:$0x1]
      %v296 = vlaneseq
      %v297 = vshrl.u32 %v296, 7
      %v298 = vsub.s32 0, %v297
      %v299 = vrot.slane %v294, %v298
      %v304 = vunpack.c.l.b16 %v291
      %v305 = vunpack.c.l.b16 %v292
      %v306 = vunpack.c.l.b16 %v293
      %v307 = vpack.c.b16 %v305, %v304
      %v308 = vpack.c.b16 %v306, %v306
      %vm310 = vcmask 195584
      %v312 = vsel %vm310, %v290, 0
      %vm314 = vcmask 1043456
      %v316 = vsel %vm314, %v308, 0
      %318 = vmatprep.subr.bf16.mxu0 0
      %319 = vmatpush1.bf16.msra.mxu0 %v307
      %320 = vmatprep.subr.bf16.mxu0 0
      %321 = vmatpush1.bf16.msra.mxu0 %v316
      %322 = vmatprep.subr.bf16.mxu0 0
      %323 = vmatpush1.bf16.msra.mxu0 0
      %324 = vmatprep.subr.bf16.mxu0 0
      %325 = vmatpush1.bf16.msra.mxu0 0
      %326 = vmatprep.subr.bf16.mxu0 0
      %327 = vmatpush1.bf16.msra.mxu0 0
      %328 = vmatprep.subr.bf16.mxu0 0
      %329 = vmatpush1.bf16.msra.mxu0 0
      %330 = vmatprep.subr.bf16.mxu0 0
      %331 = vmatpush1.bf16.msra.mxu0 0
      %332 = vmatprep.subr.bf16.mxu0 0
      %333 = vmatpush1.bf16.msra.mxu0 0
      %334 = vmatprep.subr.bf16.mxu0 0
      %335 = vmatpush1.bf16.msra.mxu0 0
      %336 = vmatprep.subr.bf16.mxu0 0
      %337 = vmatpush1.bf16.msra.mxu0 0
      %338 = vmatprep.subr.bf16.mxu0 0
      %339 = vmatpush1.bf16.msra.mxu0 0
      %340 = vmatprep.subr.bf16.mxu0 0
      %341 = vmatpush1.bf16.msra.mxu0 0
      %342 = vmatprep.subr.bf16.mxu0 0
      %343 = vmatpush1.bf16.msra.mxu0 0
      %344 = vmatprep.subr.bf16.mxu0 0
      %345 = vmatpush1.bf16.msra.mxu0 0
      %346 = vmatprep.subr.bf16.mxu0 0
      %347 = vmatpush1.bf16.msra.mxu0 0
      %348 = vmatprep.subr.bf16.mxu0 0
      %349 = vmatpush1.bf16.msra.mxu0 0
      %350 = vmatprep.mubr.bf16.mxu0 0
      %351 = vmatmul.mubr.bf16.gmra.mrb[0].mxu0 %v312
      %v352 = vpop.f32.mrb[0].mxu0
      %v353 = vadd.f32 %v299, %v352
      %v354 = vpop.f32.mrb[0].mxu0
      %v355 = vpop.f32.mrb[0].mxu0
      %v356 = vpop.f32.mrb[0].mxu0
      %357 = vdwg.mxu0
      %vm358 = vcmask 31744
      %359 = vst.msk [vmem:[%s219] sm:$0xff] %vm358, %v353
      %p360 = scmp.lt.s32.totalorder %s16, 1
      %s361 = scalar_select %p360, %s16, 1
      %s362 = smul.addr %s361, 8
      %s363 = scalar_lea.vmem %s5, %s362
      // Predicated region
      $region41: #{tpu_custom_call.1} parent=39 // pred_check
        %p364 = pneg %p144
      $region42: #{tpu_custom_call.1} parent=39 // pred_check_branch
        %366 = sbr.rel (%p364) target = $region44
      $region43: #{tpu_custom_call.1} parent=39 // pred_region
        _
      $region44: #{tpu_custom_call.1} parent=39 // pred_fallthru
        _
    $region40: #{tpu_custom_call.1} parent=5 // pred_fallthru
      _
    %p367 = scmp.le.s32.totalorder 2, %s11
    // Predicated region
    $region45: #{tpu_custom_call.1} parent=5 // pred_check
      %p368 = pneg %p367
    $region46: #{tpu_custom_call.1} parent=5 // pred_check_branch
      %370 = sbr.rel (%p368) target = $region48
    $region47: #{tpu_custom_call.1} parent=5 // pred_region
      %s371 = ssub.s32 %s11, 2
      // Predicated region
      $region49: #{tpu_custom_call.1} parent=47 // pred_check
        %p372 = pneg %p150
      $region50: #{tpu_custom_call.1} parent=47 // pred_check_branch
        %374 = sbr.rel (%p372) target = $region52
      $region51: #{tpu_custom_call.1} parent=47 // pred_region
        %p375 = scmp.lt.s32.totalorder %s17, 1
        %s376 = scalar_select %p375, %s17, 1
        %s377 = smul.addr %s376, 8
        %s378 = scalar_lea.vmem %s5, %s377
      $region52: #{tpu_custom_call.1} parent=47 // pred_fallthru
        _
    $region48: #{tpu_custom_call.1} parent=5 // pred_fallthru
      _
  $region6: #{tpu_custom_call.1} parent=0 // loop_footer
    %s15 = sadd.s32 1, %s11
  $region7: #{tpu_custom_call.1} parent=0 // loop_footer_branch
    %10 = sbr.rel target = $region3
  $region8: #{tpu_custom_call.1} parent=0 // loop_exit
    _

</llo_original>
